<compile_context>
chip_gen: v5e
topology: v5e:2x2
jax: 0.10.0
libtpu: 0.0.40
codegen_flags: <defaults>
</compile_context>

<pallas_src>
import jax
import jax.numpy as jnp
from jax.experimental import pallas as pl
from jax.experimental.pallas import tpu as pltpu


# ---- static layer geometry -------------------------------------------------
_IN = (192, 64, 32, 16, 8)
_OUT = (64, 32, 16, 8, 1)
_ROW_OFF = (0, 192, 256, 288)     # W^T row offsets of the 4 MXU layers (16-aligned)
_W_ROWS = 304                     # 192+64+32+16, multiple of 16
_LANES = 128
_B_ROWS = 8                       # bias slab rows: 0..4 biases, row 5 = last-layer W
_W4_ROW = 5


def _sigmoid(x):
    # single EUP tanh instead of exp + add + divide
    return 0.5 * (jnp.tanh(0.5 * x) + 1.0)


def mlp_kernel(x_ref, w_ref, b_ref, o_ref):
    """x_ref: (TB,192) bf16; w_ref: (304,128) bf16 packed W^T; b_ref: (8,128) f32."""
    h = x_ref[...]                                        # (TB,192) bf16 LHS
    for layer in range(4):                                # MXU layers: 192->64->32->16->8
        k, n, r = _IN[layer], _OUT[layer], _ROW_OFF[layer]
        w = w_ref[r:r + k, 0:n]                           # (k, n) bf16, VMEM-resident
        b = b_ref[layer:layer + 1, 0:n]                   # (1, n) f32
        z = jnp.dot(h, w, preferred_element_type=jnp.float32) + b   # f32 accumulate
        a = _sigmoid(z)                                   # f32 on EUP
        h = a.astype(jnp.bfloat16) if layer < 3 else a    # keep f32 for the VPU tail
    # Final (8 -> 1) layer off the MXU: broadcast-mul + lane reduce (VPU/XLU).
    w4 = b_ref[_W4_ROW:_W4_ROW + 1, 0:8]                  # (1, 8) f32, lane-packed weights
    b4 = b_ref[4:5, 0:1]                                  # (1, 1) f32
    z4 = jnp.sum(h * w4, axis=-1, keepdims=True) + b4     # (TB, 1) f32
    o_ref[...] = _sigmoid(z4).astype(o_ref.dtype)


def prepare_params(params):
    """One-time packing (cache the result; not in the per-call path).

    params: list of (W, b), W shaped (out, in) like torch.nn.Linear.
    Returns:
      w_packed: (304, 128) bf16 — W^T blocks of layers 0..3 stacked row-major.
      b_packed: (8, 128) f32   — rows 0..4 biases, row 5 lanes 0..7 = layer-4 weights.
    """
    w_packed = jnp.zeros((_W_ROWS, _LANES), jnp.float32)
    b_packed = jnp.zeros((_B_ROWS, _LANES), jnp.float32)
    for layer in range(4):
        W, b = params[layer]
        k, n, r = _IN[layer], _OUT[layer], _ROW_OFF[layer]
        w_packed = w_packed.at[r:r + k, 0:n].set(jnp.asarray(W, jnp.float32).T)
        b_packed = b_packed.at[layer, 0:n].set(jnp.asarray(b, jnp.float32))
    W4, b4 = params[4]
    b_packed = b_packed.at[4, 0:1].set(jnp.asarray(b4, jnp.float32).reshape(1))
    b_packed = b_packed.at[_W4_ROW, 0:8].set(jnp.asarray(W4, jnp.float32).reshape(8))
    return w_packed.astype(jnp.bfloat16), b_packed


def mlp_forward(x, w_packed, b_packed, *, block_b=2048):
    """x: (B, 192) float -> (B, 1) f32."""
    x = jnp.asarray(x)
    B = x.shape[0]
    xb = x.astype(jnp.bfloat16)          # x dominates HBM bytes: move it in bf16

    # 16-row granularity keeps the tiled path legal for bf16 (16,128) packing.
    unit = 16
    B_r = ((B + unit - 1) // unit) * unit
    if B_r >= 2 * unit:
        # >= 2 grid steps so the "parallel" batch axis shards across v7x's 2 TCs.
        half = ((pl.cdiv(B_r, 2) + unit - 1) // unit) * unit
        tb = min(block_b, half)
    else:
        tb = B_r
    B_pad = pl.cdiv(B_r, tb) * tb
    if B_pad != B:
        xb = jnp.pad(xb, ((0, B_pad - B), (0, 0)))        # zero-pad: no NaNs downstream
    grid = (B_pad // tb,)

    out = pl.pallas_call(
        mlp_kernel,
        out_shape=jax.ShapeDtypeStruct((B_pad, 1), jnp.float32),
        grid=grid,
        in_specs=[
            pl.BlockSpec((tb, 192), lambda i: (i, 0)),           # batch tile (bf16)
            pl.BlockSpec((_W_ROWS, _LANES), lambda i: (0, 0)),   # resident bf16 weights
            pl.BlockSpec((_B_ROWS, _LANES), lambda i: (0, 0)),   # resident f32 biases
        ],
        out_specs=pl.BlockSpec((tb, 1), lambda i: (i, 0)),
        compiler_params=pltpu.CompilerParams(
            dimension_semantics=("parallel",)),
    )(xb, w_packed, b_packed)
    return out[:B]


def init_params(key):
    """Deterministic torch.nn.Linear-style init: U(-1/sqrt(fan_in), +1/sqrt(fan_in))."""
    params = []
    for fan_in, fan_out in zip(_IN, _OUT):
        key, kw, kb = jax.random.split(key, 3)
        bound = 1.0 / jnp.sqrt(jnp.float32(fan_in))
        W = jax.random.uniform(kw, (fan_out, fan_in), jnp.float32, -bound, bound)
        b = jax.random.uniform(kb, (fan_out,), jnp.float32, -bound, bound)
        params.append((W, b))
    return params


def reference_forward_f32(x, params):
    h = jnp.asarray(x, jnp.float32)
    for (W, b) in params:
        h = jax.nn.sigmoid(h @ W.T + b)
    return h


def reference_forward_matched(x, params):
    """Reference with exactly the kernel's casts (bf16 x/W, f32 accumulate, f32 tail)."""
    h = jnp.asarray(x, jnp.float32).astype(jnp.bfloat16)
    for layer in range(4):
        W, b = params[layer]
        wt = jnp.asarray(W, jnp.float32).T.astype(jnp.bfloat16)
        z = jnp.dot(h, wt, preferred_element_type=jnp.float32) + b[None, :]
        a = _sigmoid(z)
        h = a.astype(jnp.bfloat16) if layer < 3 else a
    W4, b4 = params[4]
    z4 = jnp.sum(h * jnp.asarray(W4, jnp.float32).reshape(1, 8),
                 axis=-1, keepdims=True) + b4
    return _sigmoid(z4)


if __name__ == "__main__":
    key = jax.random.PRNGKey(0)
    key, kx = jax.random.split(key)
    params = init_params(key)
    w_packed, b_packed = prepare_params(params)      # one-time packing

    # Spec shape from the PyTorch module: x1 = torch.randn(1, 192)
    x1 = jax.random.normal(kx, (1, 192), jnp.float32)
    out1 = jax.block_until_ready(mlp_forward(x1, w_packed, b_packed))
    assert out1.shape == (1, 1), out1.shape
    ref1_f32 = reference_forward_f32(x1, params)
    ref1_bf = reference_forward_matched(x1, params)
    assert jnp.allclose(out1, ref1_bf, atol=2e-3), (out1, ref1_bf)
    assert jnp.allclose(out1, ref1_f32, atol=2e-2), (out1, ref1_f32)

    # Small batched run exercising padding + the >=2-step parallel grid path.
    key, kxb = jax.random.split(key)
    xb = jax.random.normal(kxb, (48, 192), jnp.float32)
    outb = jax.block_until_ready(mlp_forward(xb, w_packed, b_packed))
    assert outb.shape == (48, 1), outb.shape
    refb_f32 = reference_forward_f32(xb, params)
    refb_bf = reference_forward_matched(xb, params)
    assert jnp.allclose(outb, refb_bf, atol=2e-3), \
        float(jnp.max(jnp.abs(outb - refb_bf)))
    assert jnp.allclose(outb, refb_f32, atol=2e-2), \
        float(jnp.max(jnp.abs(outb - refb_f32)))

    print("KERNEL_OK")
</pallas_src>

<mosaic_0001>
module attributes {stable_mosaic.version = 11 : i64} {
  func.func @mlp_kernel(%arg0: i32, %arg1: memref<16x192xbf16, #tpu.memory_space<vmem>>, %arg2: memref<304x128xbf16, #tpu.memory_space<vmem>>, %arg3: memref<8x128xf32, #tpu.memory_space<vmem>>, %arg4: memref<16x1xf32, #tpu.memory_space<vmem>>) attributes {dimension_semantics = [#tpu.dimension_semantics<parallel>], iteration_bounds = array<i64: 1>, scalar_prefetch = 0 : i64, scratch_operands = 0 : i64, tpu.core_type = #tpu.core_type<tc>, window_params = [{transform_indices = @transform_0, window_bounds = array<i64: 16, 192>}, {pipeline_mode = #tpu.pipeline_mode<synchronous>, transform_indices = @transform_1, window_bounds = array<i64: 304, 128>}, {pipeline_mode = #tpu.pipeline_mode<synchronous>, transform_indices = @transform_2, window_bounds = array<i64: 8, 128>}, {transform_indices = @transform_3, window_bounds = array<i64: 16, 1>}]} {
    %c0 = arith.constant 0 : index
    %c0_0 = arith.constant 0 : index
    %0 = vector.load %arg1[%c0, %c0_0] : memref<16x192xbf16, #tpu.memory_space<vmem>>, vector<16x192xbf16>
    %c0_1 = arith.constant 0 : index
    %c0_2 = arith.constant 0 : index
    %1 = vector.load %arg2[%c0_1, %c0_2] : memref<304x128xbf16, #tpu.memory_space<vmem>>, vector<192x64xbf16>
    %c0_3 = arith.constant 0 : index
    %c0_4 = arith.constant 0 : index
    %2 = vector.load %arg3[%c0_3, %c0_4] : memref<8x128xf32, #tpu.memory_space<vmem>>, vector<1x64xf32>
    %cst = arith.constant dense<0.000000e+00> : vector<16x64xf32>
    %3 = tpu.matmul %0, %1, %cst {dimension_numbers = #tpu.dot_dimension_numbers<[1], [0], [0], [1], [0, 0, 1, 1], [], []>} : vector<16x192xbf16>, vector<192x64xbf16>, vector<16x64xf32> -> vector<16x64xf32>
    %4 = vector.broadcast %2 : vector<1x64xf32> to vector<16x64xf32>
    %5 = arith.addf %3, %4 : vector<16x64xf32>
    %cst_5 = arith.constant 5.000000e-01 : f32
    %6 = vector.broadcast %cst_5 : f32 to vector<16x64xf32>
    %7 = arith.mulf %6, %5 : vector<16x64xf32>
    %8 = math.tanh %7 : vector<16x64xf32>
    %cst_6 = arith.constant 1.000000e+00 : f32
    %9 = vector.broadcast %cst_6 : f32 to vector<16x64xf32>
    %10 = arith.addf %8, %9 : vector<16x64xf32>
    %cst_7 = arith.constant 5.000000e-01 : f32
    %11 = vector.broadcast %cst_7 : f32 to vector<16x64xf32>
    %12 = arith.mulf %11, %10 : vector<16x64xf32>
    %13 = arith.truncf %12 : vector<16x64xf32> to vector<16x64xbf16>
    %c192 = arith.constant 192 : index
    %c0_8 = arith.constant 0 : index
    %14 = vector.load %arg2[%c192, %c0_8] : memref<304x128xbf16, #tpu.memory_space<vmem>>, vector<64x32xbf16>
    %c1 = arith.constant 1 : index
    %c0_9 = arith.constant 0 : index
    %15 = vector.load %arg3[%c1, %c0_9] : memref<8x128xf32, #tpu.memory_space<vmem>>, vector<1x32xf32>
    %cst_10 = arith.constant dense<0.000000e+00> : vector<16x32xf32>
    %16 = tpu.matmul %13, %14, %cst_10 {dimension_numbers = #tpu.dot_dimension_numbers<[1], [0], [0], [1], [0, 0, 1, 1], [], []>} : vector<16x64xbf16>, vector<64x32xbf16>, vector<16x32xf32> -> vector<16x32xf32>
    %17 = vector.broadcast %15 : vector<1x32xf32> to vector<16x32xf32>
    %18 = arith.addf %16, %17 : vector<16x32xf32>
    %cst_11 = arith.constant 5.000000e-01 : f32
    %19 = vector.broadcast %cst_11 : f32 to vector<16x32xf32>
    %20 = arith.mulf %19, %18 : vector<16x32xf32>
    %21 = math.tanh %20 : vector<16x32xf32>
    %cst_12 = arith.constant 1.000000e+00 : f32
    %22 = vector.broadcast %cst_12 : f32 to vector<16x32xf32>
    %23 = arith.addf %21, %22 : vector<16x32xf32>
    %cst_13 = arith.constant 5.000000e-01 : f32
    %24 = vector.broadcast %cst_13 : f32 to vector<16x32xf32>
    %25 = arith.mulf %24, %23 : vector<16x32xf32>
    %26 = arith.truncf %25 : vector<16x32xf32> to vector<16x32xbf16>
    %c256 = arith.constant 256 : index
    %c0_14 = arith.constant 0 : index
    %27 = vector.load %arg2[%c256, %c0_14] : memref<304x128xbf16, #tpu.memory_space<vmem>>, vector<32x16xbf16>
    %c2 = arith.constant 2 : index
    %c0_15 = arith.constant 0 : index
    %28 = vector.load %arg3[%c2, %c0_15] : memref<8x128xf32, #tpu.memory_space<vmem>>, vector<1x16xf32>
    %cst_16 = arith.constant dense<0.000000e+00> : vector<16x16xf32>
    %29 = tpu.matmul %26, %27, %cst_16 {dimension_numbers = #tpu.dot_dimension_numbers<[1], [0], [0], [1], [0, 0, 1, 1], [], []>} : vector<16x32xbf16>, vector<32x16xbf16>, vector<16x16xf32> -> vector<16x16xf32>
    %30 = vector.broadcast %28 : vector<1x16xf32> to vector<16x16xf32>
    %31 = arith.addf %29, %30 : vector<16x16xf32>
    %cst_17 = arith.constant 5.000000e-01 : f32
    %32 = vector.broadcast %cst_17 : f32 to vector<16x16xf32>
    %33 = arith.mulf %32, %31 : vector<16x16xf32>
    %34 = math.tanh %33 : vector<16x16xf32>
    %cst_18 = arith.constant 1.000000e+00 : f32
    %35 = vector.broadcast %cst_18 : f32 to vector<16x16xf32>
    %36 = arith.addf %34, %35 : vector<16x16xf32>
    %cst_19 = arith.constant 5.000000e-01 : f32
    %37 = vector.broadcast %cst_19 : f32 to vector<16x16xf32>
    %38 = arith.mulf %37, %36 : vector<16x16xf32>
    %39 = arith.truncf %38 : vector<16x16xf32> to vector<16x16xbf16>
    %c288 = arith.constant 288 : index
    %c0_20 = arith.constant 0 : index
    %40 = vector.load %arg2[%c288, %c0_20] : memref<304x128xbf16, #tpu.memory_space<vmem>>, vector<16x8xbf16>
    %c3 = arith.constant 3 : index
    %c0_21 = arith.constant 0 : index
    %41 = vector.load %arg3[%c3, %c0_21] : memref<8x128xf32, #tpu.memory_space<vmem>>, vector<1x8xf32>
    %cst_22 = arith.constant dense<0.000000e+00> : vector<16x8xf32>
    %42 = tpu.matmul %39, %40, %cst_22 {dimension_numbers = #tpu.dot_dimension_numbers<[1], [0], [0], [1], [0, 0, 1, 1], [], []>} : vector<16x16xbf16>, vector<16x8xbf16>, vector<16x8xf32> -> vector<16x8xf32>
    %43 = vector.broadcast %41 : vector<1x8xf32> to vector<16x8xf32>
    %44 = arith.addf %42, %43 : vector<16x8xf32>
    %cst_23 = arith.constant 5.000000e-01 : f32
    %45 = vector.broadcast %cst_23 : f32 to vector<16x8xf32>
    %46 = arith.mulf %45, %44 : vector<16x8xf32>
    %47 = math.tanh %46 : vector<16x8xf32>
    %cst_24 = arith.constant 1.000000e+00 : f32
    %48 = vector.broadcast %cst_24 : f32 to vector<16x8xf32>
    %49 = arith.addf %47, %48 : vector<16x8xf32>
    %cst_25 = arith.constant 5.000000e-01 : f32
    %50 = vector.broadcast %cst_25 : f32 to vector<16x8xf32>
    %51 = arith.mulf %50, %49 : vector<16x8xf32>
    %c5 = arith.constant 5 : index
    %c0_26 = arith.constant 0 : index
    %52 = vector.load %arg3[%c5, %c0_26] : memref<8x128xf32, #tpu.memory_space<vmem>>, vector<1x8xf32>
    %c4 = arith.constant 4 : index
    %c0_27 = arith.constant 0 : index
    %53 = vector.load %arg3[%c4, %c0_27] : memref<8x128xf32, #tpu.memory_space<vmem>>, vector<1x1xf32>
    %54 = vector.broadcast %52 : vector<1x8xf32> to vector<16x8xf32>
    %55 = arith.mulf %51, %54 : vector<16x8xf32>
    %cst_28 = arith.constant dense<0.000000e+00> : vector<16xf32>
    %56 = vector.multi_reduction <add>, %55, %cst_28 [1] : vector<16x8xf32> to vector<16xf32>
    %57 = vector.shape_cast %56 : vector<16xf32> to vector<16x1xf32>
    %58 = vector.broadcast %53 : vector<1x1xf32> to vector<16x1xf32>
    %59 = arith.addf %57, %58 : vector<16x1xf32>
    %cst_29 = arith.constant 5.000000e-01 : f32
    %60 = vector.broadcast %cst_29 : f32 to vector<16x1xf32>
    %61 = arith.mulf %60, %59 : vector<16x1xf32>
    %62 = math.tanh %61 : vector<16x1xf32>
    %cst_30 = arith.constant 1.000000e+00 : f32
    %63 = vector.broadcast %cst_30 : f32 to vector<16x1xf32>
    %64 = arith.addf %62, %63 : vector<16x1xf32>
    %cst_31 = arith.constant 5.000000e-01 : f32
    %65 = vector.broadcast %cst_31 : f32 to vector<16x1xf32>
    %66 = arith.mulf %65, %64 : vector<16x1xf32>
    %c0_32 = arith.constant 0 : index
    %c0_33 = arith.constant 0 : index
    %67 = vector.load %arg4[%c0_32, %c0_33] : memref<16x1xf32, #tpu.memory_space<vmem>>, vector<16x1xf32>
    tpu.vector_store %arg4[%c0_32, %c0_33], %66 {strides = array<i32>} : memref<16x1xf32, #tpu.memory_space<vmem>>, vector<16x1xf32>,
    return
  }
  func.func @transform_0(%arg0: i32) -> (i32, i32) {
    %c0_i32 = arith.constant 0 : i32
    %c0_i32_0 = arith.constant 0 : i32
    return %arg0, %c0_i32 : i32, i32
  }
  func.func @transform_1(%arg0: i32) -> (i32, i32) {
    %c0_i32 = arith.constant 0 : i32
    %c0_i32_0 = arith.constant 0 : i32
    %c0_i32_1 = arith.constant 0 : i32
    return %c0_i32, %c0_i32_0 : i32, i32
  }
  func.func @transform_2(%arg0: i32) -> (i32, i32) {
    %c0_i32 = arith.constant 0 : i32
    %c0_i32_0 = arith.constant 0 : i32
    %c0_i32_1 = arith.constant 0 : i32
    return %c0_i32, %c0_i32_0 : i32, i32
  }
  func.func @transform_3(%arg0: i32) -> (i32, i32) {
    %c0_i32 = arith.constant 0 : i32
    %c0_i32_0 = arith.constant 0 : i32
    return %arg0, %c0_i32 : i32, i32
  }
}

</mosaic_0001>

<llo_original>
// kernel: tpu_custom_call.1
$region0: #{tpu_custom_call.1}
  #allocation0 [shape = 'u32[]', space=smem, size = 0x4, offset = 0x4, fixed_abs, tag = 'smem constant byte address 0x4 - core index']
  #allocation1 [shape = 'u32[72,128]{1,0:T(1,128)}', space=vmem, size = 0x9000, scoped, tag = 'internal scratch']
  %s0 = inlined_call_operand.hbm [shape: bf16[16,192], index: 0, kind: input, shape index: {}]
  %s1 = inlined_call_operand.hbm [shape: bf16[304,128], index: 1, kind: input, shape index: {}]
  %s2 = inlined_call_operand.hbm [shape: f32[8,128], index: 2, kind: input, shape index: {}]
  %s3 = inlined_call_operand.vmem [shape: f32[16,1], index: 3, kind: output, shape index: {}]
  %s4 = sld [smem:[#allocation0]]
  $region34: #{tpu_custom_call.1} parent=0
    _
  %s6 = ssub.s32 1, %s4
  %s7 = scalar_select 0, %s6, %s4
  $region1: #{tpu_custom_call.1} parent=0
    #allocation2 [shape = 'u8[8192]{0}', space=vmem, size = 0x2000, scoped, tag = 'input window, operand 0, single buffered']
    #allocation3 [shape = 's32[1]{0}', space=sflag, size = 0x4, scoped, tag = 'scoped memory for tpu_custom_call.1']
    #allocation4 [shape = 'u8[77824]{0}', space=vmem, size = 0x13000, scoped, tag = 'input window, operand 1, single buffered']
    #allocation5 [shape = 's32[1]{0}', space=sflag, size = 0x4, scoped, tag = 'scoped memory for tpu_custom_call.1']
    #allocation6 [shape = 'u8[4096]{0}', space=vmem, size = 0x1000, scoped, tag = 'input window, operand 2, single buffered']
    %8 = vsyncpa [#allocation3], 0
    %9 = vsyncpa [#allocation5], 0
    // Predicated region
    $region2: #{tpu_custom_call.1} parent=1 // pred_check
      _
    $region3: #{tpu_custom_call.1} parent=1 // pred_check_branch
      %11 = sbr.rel (0) target = $region5
    $region4: #{tpu_custom_call.1} parent=1 // pred_region
      %13 = vsyncadd [#allocation3], 0
      %s14 = sshll.u32 %s0, 4
      %s15 = int_to_ptr.hbm [resolvable:$true] %s14
      %s16 = sshll.u32 [#allocation2], 4
      %s17 = int_to_ptr.vmem [resolvable:$true] %s16
      %22 = dma.hbm_to_vmem [thread:$0]  %s15, 256, %s17, [#allocation3], 128, 128, 8
    $region5: #{tpu_custom_call.1} parent=1 // pred_fallthru
      _
    // Predicated region
    $region6: #{tpu_custom_call.1} parent=1 // pred_check
      _
    $region7: #{tpu_custom_call.1} parent=1 // pred_check_branch
      %24 = sbr.rel (0) target = $region9
    $region8: #{tpu_custom_call.1} parent=1 // pred_region
      %26 = vsyncadd [#allocation5], 0
      %s27 = sshll.u32 %s1, 4
      %s28 = int_to_ptr.hbm [resolvable:$true] %s27
      %s29 = sshll.u32 [#allocation4], 4
      %s30 = int_to_ptr.vmem [resolvable:$true] %s29
      %35 = dma.hbm_to_vmem [thread:$0]  %s28, 2432, %s30, [#allocation5], 64, 64, 4
    $region9: #{tpu_custom_call.1} parent=1 // pred_fallthru
      _
    // Predicated region
    $region10: #{tpu_custom_call.1} parent=1 // pred_check
      _
    $region11: #{tpu_custom_call.1} parent=1 // pred_check_branch
      %37 = sbr.rel (0) target = $region13
    $region12: #{tpu_custom_call.1} parent=1 // pred_region
      %39 = vsyncadd [#allocation5], 0
      %s41 = sshll.u32 %s2, 4
      %s42 = int_to_ptr.hbm [resolvable:$true] %s41
      %s43 = sshll.u32 [#allocation6], 4
      %s44 = int_to_ptr.vmem [resolvable:$true] %s43
      %46 = dma.hbm_to_vmem [thread:$0]  %s42, 128, %s44, [#allocation5]
    $region13: #{tpu_custom_call.1} parent=1 // pred_fallthru
      _
    // Predicated region
    $region14: #{tpu_custom_call.1} parent=1 // pred_check
      _
    $region15: #{tpu_custom_call.1} parent=1 // pred_check_branch
      %48 = sbr.rel (0) target = $region17
    $region16: #{tpu_custom_call.1} parent=1 // pred_region
      %50 = dma.done [#allocation3], 256
    $region17: #{tpu_custom_call.1} parent=1 // pred_fallthru
      _
    // Predicated region
    $region18: #{tpu_custom_call.1} parent=1 // pred_check
      _
    $region19: #{tpu_custom_call.1} parent=1 // pred_check_branch
      %52 = sbr.rel (0) target = $region21
    $region20: #{tpu_custom_call.1} parent=1 // pred_region
      %54 = dma.done [#allocation5], 2432
    $region21: #{tpu_custom_call.1} parent=1 // pred_fallthru
      _
    // Predicated region
    $region22: #{tpu_custom_call.1} parent=1 // pred_check
      _
    $region23: #{tpu_custom_call.1} parent=1 // pred_check_branch
      %56 = sbr.rel (0) target = $region25
    $region24: #{tpu_custom_call.1} parent=1 // pred_region
      %58 = dma.done [#allocation5], 128
    $region25: #{tpu_custom_call.1} parent=1 // pred_fallthru
      _
    %v60 = vld [vmem:[#allocation2] sm:$0xff]
    %v61 = vld [vmem:[#allocation2 + $0x8] sm:$0xff]
    %v62 = vld [vmem:[#allocation4] sm:$0xf]
    %v63 = vld [vmem:[#allocation4 + $0x4] sm:$0xf]
    %v64 = vld [vmem:[#allocation4 + $0x8] sm:$0xf]
    %v65 = vld [vmem:[#allocation4 + $0xc] sm:$0xf]
    %v66 = vld [vmem:[#allocation4 + $0x10] sm:$0xf]
    %v67 = vld [vmem:[#allocation4 + $0x14] sm:$0xf]
    %v68 = vld [vmem:[#allocation4 + $0x18] sm:$0xf]
    %v69 = vld [vmem:[#allocation4 + $0x1c] sm:$0xf]
    %v70 = vld [vmem:[#allocation4 + $0x20] sm:$0xf]
    %v71 = vld [vmem:[#allocation4 + $0x24] sm:$0xf]
    %v72 = vld [vmem:[#allocation4 + $0x28] sm:$0xf]
    %v73 = vld [vmem:[#allocation4 + $0x2c] sm:$0xf]
    %v74 = vld [vmem:[#allocation4 + $0x30] sm:$0xf]
    %v75 = vld [vmem:[#allocation4 + $0x34] sm:$0xf]
    %v76 = vld [vmem:[#allocation4 + $0x38] sm:$0xf]
    %v77 = vld [vmem:[#allocation4 + $0x3c] sm:$0xf]
    %v78 = vld [vmem:[#allocation4 + $0x40] sm:$0xf]
    %v79 = vld [vmem:[#allocation4 + $0x44] sm:$0xf]
    %v80 = vld [vmem:[#allocation4 + $0x48] sm:$0xf]
    %v81 = vld [vmem:[#allocation4 + $0x4c] sm:$0xf]
    %v82 = vld [vmem:[#allocation4 + $0x50] sm:$0xf]
    %v83 = vld [vmem:[#allocation4 + $0x54] sm:$0xf]
    %v84 = vld [vmem:[#allocation4 + $0x58] sm:$0xf]
    %v85 = vld [vmem:[#allocation4 + $0x5c] sm:$0xf]
    %v86 = vld [vmem:[#allocation6] sm:$0x1]
    %v87 = vperm.slane %v86, 0
    %v90 = vunpack.c.l.b16 %v60
    %v91 = vunpack.c.h.b16 %v60
    %v92 = vunpack.c.l.b16 %v61
    %v93 = vunpack.c.h.b16 %v61
    %v94 = vpack.c.b16 %v92, %v90
    %v95 = vpack.c.b16 %v93, %v91
    %v121 = vunpack.c.l.b16 %v62
    %v122 = vunpack.c.l.b16 %v63
    %v123 = vunpack.c.l.b16 %v64
    %v124 = vunpack.c.l.b16 %v65
    %v125 = vunpack.c.l.b16 %v66
    %v126 = vunpack.c.l.b16 %v67
    %v127 = vunpack.c.l.b16 %v68
    %v128 = vunpack.c.l.b16 %v69
    %v129 = vunpack.c.l.b16 %v70
    %v130 = vunpack.c.l.b16 %v71
    %v131 = vunpack.c.l.b16 %v72
    %v132 = vunpack.c.l.b16 %v73
    %v133 = vunpack.c.l.b16 %v74
    %v134 = vunpack.c.l.b16 %v75
    %v135 = vunpack.c.l.b16 %v76
    %v136 = vunpack.c.l.b16 %v77
    %v137 = vunpack.c.l.b16 %v78
    %v138 = vunpack.c.l.b16 %v79
    %v139 = vunpack.c.l.b16 %v80
    %v140 = vunpack.c.l.b16 %v81
    %v141 = vunpack.c.l.b16 %v82
    %v142 = vunpack.c.l.b16 %v83
    %v143 = vunpack.c.l.b16 %v84
    %v144 = vunpack.c.l.b16 %v85
    %v145 = vpack.c.b16 %v122, %v121
    %v146 = vpack.c.b16 %v124, %v123
    %v147 = vpack.c.b16 %v126, %v125
    %v148 = vpack.c.b16 %v128, %v127
    %v149 = vpack.c.b16 %v130, %v129
    %v150 = vpack.c.b16 %v132, %v131
    %v151 = vpack.c.b16 %v134, %v133
    %v152 = vpack.c.b16 %v136, %v135
    %v153 = vpack.c.b16 %v138, %v137
    %v154 = vpack.c.b16 %v140, %v139
    %v155 = vpack.c.b16 %v142, %v141
    %v156 = vpack.c.b16 %v144, %v143
    %vm169 = vcmask 523264
    %v171 = vsel %vm169, %v95, 0
    %173 = vmatpush.bf16.msra.mxu0 %v152
    %174 = vmatpush.bf16.msra.mxu0 %v151
    %175 = vmatpush.bf16.msra.mxu0 %v150
    %176 = vmatpush.bf16.msra.mxu0 %v149
    %177 = vmatpush.bf16.msra.mxu0 %v148
    %178 = vmatpush.bf16.msra.mxu0 %v147
    %179 = vmatpush.bf16.msra.mxu0 %v146
    %180 = vmatpush.bf16.msra.mxu0 %v145
    %181 = vmatmul.bf16.gmra.mxu0 %v94
    %v182 = vpop.f32.mrf.mxu0
    %v183 = vadd.f32 %v87, %v182
    %v184 = vpop.f32.mrf.mxu0
    %v185 = vadd.f32 %v87, %v184
    %186 = vdwg.mxu0
    %187 = vmatpush.bf16.msra.mxu0 0
    %188 = vmatpush.bf16.msra.mxu0 0
    %189 = vmatpush.bf16.msra.mxu0 0
    %190 = vmatpush.bf16.msra.mxu0 0
    %191 = vmatpush.bf16.msra.mxu0 %v156
    %192 = vmatpush.bf16.msra.mxu0 %v155
    %193 = vmatpush.bf16.msra.mxu0 %v154
    %194 = vmatpush.bf16.msra.mxu0 %v153
    %195 = vmatmul.bf16.gmra.mxu0 %v171
    %v196 = vpop.f32.mrf.mxu0
    %v197 = vadd.f32 %v183, %v196
    %v198 = vpop.f32.mrf.mxu0
    %v199 = vadd.f32 %v185, %v198
    %200 = vdwg.mxu0
    %v201 = vmul.f32 %v197, 0.5
    %v202 = vmul.f32 %v199, 0.5
    %v203 = vtanh.pop %v201
    %v204 = vtanh.pop %v202
    %v205 = vadd.f32 %v203, 1.0
    %v206 = vadd.f32 %v204, 1.0
    %v207 = vmul.f32 %v205, 0.5
    %v208 = vmul.f32 %v206, 0.5
    %v209 = vpack.c.bf16 %v208, %v207
    %v210 = vld [vmem:[#allocation4 + $0x60] sm:$0xf]
    %v211 = vld [vmem:[#allocation4 + $0x64] sm:$0xf]
    %v212 = vld [vmem:[#allocation4 + $0x68] sm:$0xf]
    %v213 = vld [vmem:[#allocation4 + $0x6c] sm:$0xf]
    %v214 = vld [vmem:[#allocation4 + $0x70] sm:$0xf]
    %v215 = vld [vmem:[#allocation4 + $0x74] sm:$0xf]
    %v216 = vld [vmem:[#allocation4 + $0x78] sm:$0xf]
    %v217 = vld [vmem:[#allocation4 + $0x7c] sm:$0xf]
    %v218 = vld [vmem:[#allocation6 + $0x1] sm:$0x1]
    %v219 = vperm.slane %v218, 0
    %v228 = vunpack.c.l.b16 %v210
    %v229 = vunpack.c.l.b16 %v211
    %v230 = vunpack.c.l.b16 %v212
    %v231 = vunpack.c.l.b16 %v213
    %v232 = vunpack.c.l.b16 %v214
    %v233 = vunpack.c.l.b16 %v215
    %v234 = vunpack.c.l.b16 %v216
    %v235 = vunpack.c.l.b16 %v217
    %v236 = vpack.c.b16 %v229, %v228
    %v237 = vpack.c.b16 %v231, %v230
    %v238 = vpack.c.b16 %v233, %v232
    %v239 = vpack.c.b16 %v235, %v234
    %v245 = vsel %vm169, %v209, 0
    %247 = vmatpush.bf16.msra.mxu0 0
    %248 = vmatpush.bf16.msra.mxu0 0
    %249 = vmatpush.bf16.msra.mxu0 0
    %250 = vmatpush.bf16.msra.mxu0 0
    %251 = vmatpush.bf16.msra.mxu0 %v239
    %252 = vmatpush.bf16.msra.mxu0 %v238
    %253 = vmatpush.bf16.msra.mxu0 %v237
    %254 = vmatpush.bf16.msra.mxu0 %v236
    %255 = vmatmul.bf16.gmra.mxu0 %v245
    %v256 = vpop.f32.mrf.mxu0
    %v257 = vadd.f32 %v219, %v256
    %v258 = vpop.f32.mrf.mxu0
    %v259 = vadd.f32 %v219, %v258
    %260 = vdwg.mxu0
    %v261 = vmul.f32 %v257, 0.5
    %v262 = vmul.f32 %v259, 0.5
    %v263 = vtanh.pop %v261
    %v264 = vtanh.pop %v262
    %v265 = vadd.f32 %v263, 1.0
    %v266 = vadd.f32 %v264, 1.0
    %v267 = vmul.f32 %v265, 0.5
    %v268 = vmul.f32 %v266, 0.5
    %v269 = vpack.c.bf16 %v268, %v267
    %v270 = vld [vmem:[#allocation4 + $0x80] sm:$0xf]
    %v271 = vld [vmem:[#allocation4 + $0x84] sm:$0xf]
    %v272 = vld [vmem:[#allocation4 + $0x88] sm:$0xf]
    %v273 = vld [vmem:[#allocation4 + $0x8c] sm:$0xf]
    %v274 = vld [vmem:[#allocation6 + $0x2] sm:$0x1]
    %v275 = vperm.slane %v274, 0
    %v280 = vunpack.c.l.b16 %v270
    %v281 = vunpack.c.l.b16 %v271
    %v282 = vunpack.c.l.b16 %v272
    %v283 = vunpack.c.l.b16 %v273
    %v284 = vpack.c.b16 %v281, %v280
    %v285 = vpack.c.b16 %v283, %v282
    %vm288 = vcmask 261120
    %v290 = vsel %vm288, %v269, 0
    %292 = vmatpush.bf16.msra.mxu0 0
    %293 = vmatpush.bf16.msra.mxu0 0
    %294 = vmatpush.bf16.msra.mxu0 0
    %295 = vmatpush.bf16.msra.mxu0 0
    %296 = vmatpush.bf16.msra.mxu0 0
    %297 = vmatpush.bf16.msra.mxu0 0
    %298 = vmatpush.bf16.msra.mxu0 %v285
    %299 = vmatpush.bf16.msra.mxu0 %v284
    %300 = vmatmul.bf16.gmra.mxu0 %v290
    %v301 = vpop.f32.mrf.mxu0
    %v302 = vadd.f32 %v275, %v301
    %v303 = vpop.f32.mrf.mxu0
    %v304 = vadd.f32 %v275, %v303
    %305 = vdwg.mxu0
    %v306 = vmul.f32 %v302, 0.5
    %v307 = vmul.f32 %v304, 0.5
    %v308 = vtanh.pop %v306
    %v309 = vtanh.pop %v307
    %v310 = vadd.f32 %v308, 1.0
    %v311 = vadd.f32 %v309, 1.0
    %v312 = vmul.f32 %v310, 0.5
    %v313 = vmul.f32 %v311, 0.5
    %v314 = vpack.c.bf16 %v313, %v312
    %v315 = vld [vmem:[#allocation4 + $0x90] sm:$0xf]
    %v316 = vld [vmem:[#allocation4 + $0x94] sm:$0xf]
    %v317 = vld [vmem:[#allocation6 + $0x3] sm:$0x1]
    %v318 = vperm.slane %v317, 0
    %v321 = vunpack.c.l.b16 %v315
    %v322 = vunpack.c.l.b16 %v316
    %v323 = vpack.c.b16 %v322, %v321
    %vm325 = vcmask 130048
    %v327 = vsel %vm325, %v314, 0
    %329 = vmatpush.bf16.msra.mxu0 0
    %330 = vmatpush.bf16.msra.mxu0 0
    %331 = vmatpush.bf16.msra.mxu0 0
    %332 = vmatpush.bf16.msra.mxu0 0
    %333 = vmatpush.bf16.msra.mxu0 0
    %334 = vmatpush.bf16.msra.mxu0 0
    %335 = vmatpush.bf16.msra.mxu0 0
    %336 = vmatpush.bf16.msra.mxu0 %v323
    %337 = vmatmul.bf16.gmra.mxu0 %v327
    %v338 = vpop.f32.mrf.mxu0
    %v339 = vadd.f32 %v318, %v338
    %v340 = vpop.f32.mrf.mxu0
    %v341 = vadd.f32 %v318, %v340
    %342 = vdwg.mxu0
    %v343 = vmul.f32 %v339, 0.5
    %v344 = vmul.f32 %v341, 0.5
    %v345 = vtanh.pop %v343
    %v346 = vtanh.pop %v344
    %v347 = vadd.f32 %v345, 1.0
    %v348 = vadd.f32 %v346, 1.0
    %v349 = vmul.f32 %v347, 0.5
    %v350 = vmul.f32 %v348, 0.5
    %v351 = vld [vmem:[#allocation6 + $0x5] sm:$0x1]
    %v352 = vld [vmem:[#allocation6 + $0x4] sm:$0x1]
    %v353 = vperm.slane %v351, 0
    %v354 = vmul.f32 %v349, %v353
    %v355 = vmul.f32 %v350, %v353
    %vm356 = vcmask 64512
    %v357 = vsel %vm356, %v354, 0.0
    %358 = vadd.xlane.f32.xlu0 %v357
    %v359 = vpop.xlane.xlu0 %358
    %v360 = vsel %vm356, %v355, 0.0
    %361 = vadd.xlane.f32.xlu0 %v360
    %v362 = vpop.xlane.xlu0 %361
    %v363 = vperm.slane %v352, 0
    %v364 = vadd.f32 %v359, %v363
    %v365 = vadd.f32 %v362, %v363
    %v366 = vmul.f32 %v364, 0.5
    %v367 = vmul.f32 %v365, 0.5
    %v368 = vtanh.pop %v366
    %v369 = vtanh.pop %v367
    %v370 = vadd.f32 %v368, 1.0
    %v371 = vadd.f32 %v369, 1.0
    %v372 = vmul.f32 %v370, 0.5
    %v373 = vmul.f32 %v371, 0.5
    %vm374 = vcmask 7168
    %375 = vst.msk [vmem:[%s3] sm:$0xff] %vm374, %v372
    %376 = vst.msk [vmem:[%s3 + $0x8] sm:$0xff] %vm374, %v373
    // Predicated region
    $region26: #{tpu_custom_call.1} parent=1 // pred_check
      _
    $region27: #{tpu_custom_call.1} parent=1 // pred_check_branch
      %378 = sbr.rel (0) target = $region29
    $region28: #{tpu_custom_call.1} parent=1 // pred_region
      _
    $region29: #{tpu_custom_call.1} parent=1 // pred_fallthru
      _
    // Predicated region
    $region30: #{tpu_custom_call.1} parent=1 // pred_check
      _
    $region31: #{tpu_custom_call.1} parent=1 // pred_check_branch
      %380 = sbr.rel (0) target = $region33
    $region32: #{tpu_custom_call.1} parent=1 // pred_region
      _
    $region33: #{tpu_custom_call.1} parent=1 // pred_fallthru
      _
    %381 = vsyncpa [#allocation3], 1
    %382 = vsyncpa [#allocation5], 1

</llo_original>
